<compile_context>
chip_gen: v7x
topology: tpu7x:2x2x1
jax: 0.10.0
libtpu: 0.0.40
codegen_flags: <defaults>
</compile_context>

<pallas_src>
import math

import jax
import jax.numpy as jnp
from jax.experimental import pallas as pl
from jax.experimental.pallas import tpu as pltpu


def _threshold3d_kernel(gamma_ref, x_ref, t_ref, o_ref):
    # gamma_ref: SMEM (1,) f32 scalar; x_ref/t_ref/o_ref: VMEM (1, rows_block, 128).
    g = gamma_ref[0]
    o_ref[...] = (x_ref[...] - t_ref[...] * g).astype(o_ref.dtype)


def _round_up(a, b):
    return -(-a // b) * b


def _sublane_multiple(dtype):
    # f32 -> 8, bf16 -> 16, int8/fp8 -> 32 (sub-32-bit dtypes pack along sublanes).
    return max(8, 32 // jnp.dtype(dtype).itemsize)


def make_threshold3d(kernel_fmn, x_shape, dtype=jnp.float32,
                     target_block_bytes=2 << 20, donate_x=False):
    """'Module init': plan tiling, build the periodic threshold once, return fwd fn.

    out[n,c,h,w] = x[n,c,h,w] - gamma * kernel_fmn[c % f, h % m, w % n]
    """
    N, C, H, W = x_shape
    f, m, n = kernel_fmn.shape
    assert C % f == 0 and H % m == 0 and W % n == 0
    total = C * H * W
    assert total % 128 == 0, "C*H*W must be a multiple of 128 for lane-dense tiling"
    rows = total // 128
    itemsize = jnp.dtype(dtype).itemsize

    sub = _sublane_multiple(dtype)
    target_rows = max(sub, target_block_bytes // (128 * itemsize))  # ~2 MiB blocks

    # The flattened (C,H,W) threshold repeats with element period f*H*W, hence a
    # row period p_rows.  If rows_block is a multiple of p_rows (and of the
    # dtype's sublane packing), every rows_block-aligned window sees the SAME
    # threshold contents -> build one rows_block-sized period, keep it resident
    # in VMEM (constant index_map), DMA it from HBM exactly once per call.
    p_elems = f * H * W
    p_rows = p_elems // math.gcd(p_elems, 128)
    align = p_rows * sub // math.gcd(p_rows, sub)  # lcm(p_rows, sub)

    if align <= 8192:
        rows_block = max(align, (target_rows // align) * align)
        rows_block = min(rows_block, _round_up(rows, align))
        periodic = True
    else:
        # Awkwardly large period: stream the full threshold (one block per chunk).
        rows_block = min(_round_up(target_rows, sub), _round_up(rows, sub))
        periodic = False

    num_chunks = pl.cdiv(rows, rows_block)

    # Build the threshold once via modular indexing of the flattened element
    # index e = ((c*H + h)*W + w); valid for any e because m|H and n|W.
    t_rows = rows_block if periodic else rows
    e = jnp.arange(t_rows * 128, dtype=jnp.int32)
    c_idx = (e // (H * W)) % f
    h_idx = (e // W) % m
    w_idx = e % n
    thresh_flat = kernel_fmn.astype(dtype)[c_idx, h_idx, w_idx].reshape(1, t_rows, 128)

    if periodic:
        t_index = lambda c, i: (0, 0, 0)          # resident; one DMA per call
    else:
        t_index = lambda c, i: (0, c, 0)          # streamed per chunk

    bytes_accessed = (2 * N * rows * 128 + thresh_flat.size) * itemsize + 4
    cost = pl.CostEstimate(flops=2 * N * rows * 128, transcendentals=0,
                           bytes_accessed=bytes_accessed)

    extra = {}
    if donate_x:
        extra["input_output_aliases"] = {1: 0}    # alias x -> out (caller drops x)

    call = pl.pallas_call(
        _threshold3d_kernel,
        out_shape=jax.ShapeDtypeStruct((N, rows, 128), dtype),
        grid=(num_chunks, N),
        in_specs=[
            pl.BlockSpec(memory_space=pltpu.MemorySpace.SMEM),              # gamma
            pl.BlockSpec((1, rows_block, 128), lambda c, i: (i, c, 0)),     # x
            pl.BlockSpec((1, rows_block, 128), t_index),                    # thresh
        ],
        out_specs=pl.BlockSpec((1, rows_block, 128), lambda c, i: (i, c, 0)),
        compiler_params=pltpu.CompilerParams(
            dimension_semantics=("parallel", "parallel"),  # megacore-splittable
            vmem_limit_bytes=48 << 20),
        cost_estimate=cost,
        **extra,
    )

    def forward(x, gamma):
        assert x.shape == (N, C, H, W) and x.dtype == jnp.dtype(dtype)
        x_flat = x.reshape(N, rows, 128)                     # free: contiguous NCHW
        gamma_arr = jnp.reshape(jnp.asarray(gamma, dtype=jnp.float32), (1,))
        out_flat = call(gamma_arr, x_flat, thresh_flat)
        return out_flat.reshape(N, C, H, W)

    return forward


if __name__ == "__main__":
    key = jax.random.PRNGKey(0)
    kx, kk = jax.random.split(key, 2)

    # Shapes consistent with the module: features=4, m=n=2 (threshold_2x2x4).
    N, C, H, W = 2, 16, 16, 16
    m, n, features = 2, 2, 4

    x = jax.random.normal(kx, (N, C, H, W), dtype=jnp.float32)
    gamma = jnp.float32(0.37)

    # Deterministic stand-in for sio.loadmat(...)['kernel'] of shape (m, n, f),
    # transposed to (features, m, n) as in __init__.
    kernel_mnf = jax.random.uniform(kk, (m, n, features), dtype=jnp.float32)
    kernel_fmn = jnp.transpose(kernel_mnf, (2, 0, 1))

    # TODO(synk): MaxPool3d's pooled values are discarded by the original module
    # (only its shape feeds the all-ones tensor), so no pooling op is emitted.
    fwd = make_threshold3d(kernel_fmn, (N, C, H, W), dtype=x.dtype)

    out = jax.block_until_ready(fwd(x, gamma))

    # Pure-JAX reference via modular indexing (independent of the tiling glue).
    c_idx = jnp.arange(C) % features
    h_idx = jnp.arange(H) % m
    w_idx = jnp.arange(W) % n
    thresh_ref = kernel_fmn[c_idx[:, None, None], h_idx[None, :, None], w_idx[None, None, :]]
    ref = x - thresh_ref[None] * gamma

    assert out.shape == (N, C, H, W) and out.dtype == x.dtype
    assert jnp.allclose(out, ref, atol=1e-6), "mismatch vs reference"
    print("KERNEL_OK")
</pallas_src>

<mosaic_0001>
module attributes {stable_mosaic.version = 11 : i64} {
  func.func @_threshold3d_kernel(%arg0: i32, %arg1: i32, %arg2: memref<1xf32, #tpu.memory_space<smem>>, %arg3: memref<1x32x128xf32, #tpu.memory_space<vmem>>, %arg4: memref<1x32x128xf32, #tpu.memory_space<vmem>>, %arg5: memref<1x32x128xf32, #tpu.memory_space<vmem>>) attributes {dimension_semantics = [#tpu.dimension_semantics<parallel>, #tpu.dimension_semantics<parallel>], iteration_bounds = array<i64: 1, 2>, scalar_prefetch = 0 : i64, scratch_operands = 0 : i64, tpu.core_type = #tpu.core_type<tc>, window_params = [{transform_indices = @transform_0, window_bounds = array<i64: 1>}, {transform_indices = @transform_1, window_bounds = array<i64: 1, 32, 128>}, {pipeline_mode = #tpu.pipeline_mode<synchronous>, transform_indices = @transform_2, window_bounds = array<i64: 1, 32, 128>}, {transform_indices = @transform_3, window_bounds = array<i64: 1, 32, 128>}]} {
    %c0 = arith.constant 0 : index
    %0 = memref.load %arg2[%c0] : memref<1xf32, #tpu.memory_space<smem>>
    %c0_0 = arith.constant 0 : index
    %c0_1 = arith.constant 0 : index
    %c0_2 = arith.constant 0 : index
    %1 = vector.load %arg3[%c0_0, %c0_1, %c0_2] : memref<1x32x128xf32, #tpu.memory_space<vmem>>, vector<1x32x128xf32>
    %c0_3 = arith.constant 0 : index
    %c0_4 = arith.constant 0 : index
    %c0_5 = arith.constant 0 : index
    %2 = vector.load %arg4[%c0_3, %c0_4, %c0_5] : memref<1x32x128xf32, #tpu.memory_space<vmem>>, vector<1x32x128xf32>
    %3 = vector.broadcast %0 : f32 to vector<1x32x128xf32>
    %4 = arith.mulf %2, %3 : vector<1x32x128xf32>
    %5 = arith.subf %1, %4 : vector<1x32x128xf32>
    %c0_6 = arith.constant 0 : index
    %c0_7 = arith.constant 0 : index
    %c0_8 = arith.constant 0 : index
    %6 = vector.load %arg5[%c0_6, %c0_7, %c0_8] : memref<1x32x128xf32, #tpu.memory_space<vmem>>, vector<1x32x128xf32>
    tpu.vector_store %arg5[%c0_6, %c0_7, %c0_8], %5 {strides = array<i32>} : memref<1x32x128xf32, #tpu.memory_space<vmem>>, vector<1x32x128xf32>,
    return
  }
  func.func @transform_0(%arg0: i32, %arg1: i32) -> i32 {
    %c0_i32 = arith.constant 0 : i32
    %c0_i32_0 = arith.constant 0 : i32
    return %c0_i32 : i32
  }
  func.func @transform_1(%arg0: i32, %arg1: i32) -> (i32, i32, i32) {
    %c0_i32 = arith.constant 0 : i32
    %c0_i32_0 = arith.constant 0 : i32
    return %arg1, %arg0, %c0_i32 : i32, i32, i32
  }
  func.func @transform_2(%arg0: i32, %arg1: i32) -> (i32, i32, i32) {
    %c0_i32 = arith.constant 0 : i32
    %c0_i32_0 = arith.constant 0 : i32
    %c0_i32_1 = arith.constant 0 : i32
    %c0_i32_2 = arith.constant 0 : i32
    return %c0_i32, %c0_i32_0, %c0_i32_1 : i32, i32, i32
  }
  func.func @transform_3(%arg0: i32, %arg1: i32) -> (i32, i32, i32) {
    %c0_i32 = arith.constant 0 : i32
    %c0_i32_0 = arith.constant 0 : i32
    return %arg1, %arg0, %c0_i32 : i32, i32, i32
  }
}

</mosaic_0001>

<llo_original>
// kernel: tpu_custom_call.1
$region0: #{tpu_custom_call.1}
  #allocation0 [shape = 'u32[]', space=smem, size = 0x4, offset = 0x4, fixed_abs, tag = 'smem constant byte address 0x4 - core index']
  #allocation1 [shape = 'u32[144,128]{1,0:T(1,128)}', space=vmem, size = 0x12000, scoped, tag = 'internal scratch']
  #allocation2 [shape = 'f32[1]{0:T(128)S(6)}', space=smem, size = 0x200, scoped, tag = 'scoped memory for tpu_custom_call.1']
  %s0 = inlined_call_operand.<no memory space> [shape: f32[1], index: 0, kind: input, shape index: {}]
  %s1 = inlined_call_operand.hbm [shape: f32[2,32,128], index: 1, kind: input, shape index: {}]
  %s2 = inlined_call_operand.hbm [shape: f32[1,32,128], index: 2, kind: input, shape index: {}]
  %s3 = inlined_call_operand.hbm [shape: f32[2,32,128], index: 3, kind: output, shape index: {}]
  %s4 = sld [smem:[#allocation0]]
  $region53: #{tpu_custom_call.1} parent=0
    _
  %s6 = ssub.s32 1, %s4
  %s7 = scalar_select 0, %s6, %s4
  %8 = sst [smem:[#allocation2]] %s0
  $region1: #{tpu_custom_call.1} parent=0
    #allocation3 [shape = 'u8[32768]{0}', space=vmem, size = 0x8000, scoped, tag = 'input window, operand 1']
    #allocation4 [shape = 's32[2]{0}', space=sflag, size = 0x8, scoped, tag = 'scoped memory for tpu_custom_call.1']
    #allocation5 [shape = 's32[2]{0}', space=sflag, size = 0x8, scoped, tag = 'scoped memory for tpu_custom_call.1']
    #allocation6 [shape = 'u8[16384]{0}', space=vmem, size = 0x4000, scoped, tag = 'input window, operand 2, single buffered']
    #allocation7 [shape = 's32[1]{0}', space=sflag, size = 0x4, scoped, tag = 'scoped memory for tpu_custom_call.1']
    #allocation8 [shape = 'u8[32768]{0}', space=vmem, size = 0x8000, scoped, tag = 'output window, operand 0']
    %9 = vsyncpa [#allocation4], 0
    %s10 = scalar_lea.sflag [#allocation4], 1
    %11 = vsyncpa %s10, 0
    %12 = vsyncpa [#allocation7], 0
    %13 = vsyncpa [#allocation5], 0
    %s14 = scalar_lea.sflag [#allocation5], 1
    %15 = vsyncpa %s14, 0
    loop: start=0, step=1, limit=4
    $region2: #{tpu_custom_call.1} parent=1 // loop_pre_header
      _
    $region3: #{tpu_custom_call.1} parent=1 // loop_header
      %s17 = sphi 0, %s21
      %p18 = scmp.ge.s32.totalorder %s17, 4
      %s24 = sphi 0, %s36
      %s25 = sphi 0, %s32
      %s26 = sphi 0, %s24
      %s27 = sphi 0, %s25
      %s28 = sphi 0, %s26
      %s29 = sphi 0, %s27
      %s37 = sphi 0, %s37
      %s39 = sphi 0, %s37
      %s40 = sphi 0, %s39
      %s54 = sphi 0, %s40
      %s62 = sphi 0, %s64
      %s65 = sphi 0, %s62
      %s66 = sphi 0, %s65
      %s82 = sphi 0, %s66
      %s86 = sphi 0, %s86
      %s88 = sphi 0, %s86
      %s89 = sphi 0, %s88
      %s103 = sphi 0, %s89
      %s111 = sphi 0, %s113
      %s114 = sphi 0, %s111
      %s115 = sphi 0, %s114
      %s131 = sphi 0, %s115
    $region4: #{tpu_custom_call.1} parent=1 // loop_header_branch
      %20 = sbr.rel (%p18) target = $region8
    $region5: #{tpu_custom_call.1} parent=1 // loop_body
      %s22 = ssub.s32 %s17, 1
      %s23 = ssub.s32 %s17, 2
      %s30 = sadd.s32 1, %s25
      %p31 = scmp.ge.s32.totalorder %s30, 2
      %s32 = scalar_select %p31, 0, %s30
      %s33 = sadd.s32 1, %s24
      %s34 = scalar_select %p31, %s33, %s24
      %p35 = scmp.ge.s32.totalorder %s34, 1
      %s36 = scalar_select %p35, 0, %s34
      %s38 = sadd.s32 %s37, 1
      %p41 = scmp.eq.s32.totalorder %s17, 1
      %p42 = scmp.ne.s32.totalorder %s37, %s39
      %p43 = scmp.eq.s32.totalorder %s17, 0
      %p44 = por %p42, %p43
      %p45 = scmp.ne.s32.totalorder %s37, %s39
      %p46 = scmp.eq.s32.totalorder %s22, 1
      %p47 = por %p45, %p46
      %p48 = scmp.ne.s32.totalorder %s39, %s40
      %p49 = scmp.eq.s32.totalorder %s22, 0
      %p50 = por %p48, %p49
      %p51 = scmp.ne.s32.totalorder %s39, %s40
      %p52 = scmp.eq.s32.totalorder %s23, 1
      %p53 = por %p51, %p52
      %p55 = scmp.ne.s32.totalorder %s40, %s54
      %p56 = scmp.eq.s32.totalorder %s23, 0
      %p57 = por %p55, %p56
      %s58 = ssub.s32 %s25, %s32
      %s59 = ssub.s32 %s24, %s36
      %s60 = sor.u32 %s58, %s59
      %p61 = scmp.eq.s32.totalorder %s60, 0
      %s63 = sadd.s32 %s62, 1
      %s64 = scalar_select %p61, %s62, %s63
      %p67 = pneg %p61
      %p68 = scmp.eq.s32.totalorder %s17, 1
      %p69 = por %p67, %p68
      %p70 = scmp.ne.s32.totalorder %s62, %s65
      %p71 = scmp.eq.s32.totalorder %s17, 0
      %p72 = por %p70, %p71
      %p73 = scmp.ne.s32.totalorder %s62, %s65
      %p74 = scmp.eq.s32.totalorder %s22, 1
      %p75 = por %p73, %p74
      %p76 = scmp.ne.s32.totalorder %s65, %s66
      %p77 = scmp.eq.s32.totalorder %s22, 0
      %p78 = por %p76, %p77
      %p79 = scmp.ne.s32.totalorder %s65, %s66
      %p80 = scmp.eq.s32.totalorder %s23, 1
      %p81 = por %p79, %p80
      %p83 = scmp.ne.s32.totalorder %s66, %s82
      %p84 = scmp.eq.s32.totalorder %s23, 0
      %p85 = por %p83, %p84
      %s87 = sadd.s32 %s86, 1
      %p90 = scmp.eq.s32.totalorder %s17, 1
      %p91 = scmp.ne.s32.totalorder %s86, %s88
      %p92 = scmp.eq.s32.totalorder %s17, 0
      %p93 = por %p91, %p92
      %p94 = scmp.ne.s32.totalorder %s86, %s88
      %p95 = scmp.eq.s32.totalorder %s22, 1
      %p96 = por %p94, %p95
      %p97 = scmp.ne.s32.totalorder %s88, %s89
      %p98 = scmp.eq.s32.totalorder %s22, 0
      %p99 = por %p97, %p98
      %p100 = scmp.ne.s32.totalorder %s88, %s89
      %p101 = scmp.eq.s32.totalorder %s23, 1
      %p102 = por %p100, %p101
      %p104 = scmp.ne.s32.totalorder %s89, %s103
      %p105 = scmp.eq.s32.totalorder %s23, 0
      %p106 = por %p104, %p105
      %s107 = ssub.s32 %s25, %s32
      %s108 = ssub.s32 %s24, %s36
      %s109 = sor.u32 %s107, %s108
      %p110 = scmp.eq.s32.totalorder %s109, 0
      %s112 = sadd.s32 %s111, 1
      %s113 = scalar_select %p110, %s111, %s112
      %p116 = pneg %p110
      %p117 = scmp.eq.s32.totalorder %s17, 1
      %p118 = por %p116, %p117
      %p119 = scmp.ne.s32.totalorder %s111, %s114
      %p120 = scmp.eq.s32.totalorder %s17, 0
      %p121 = por %p119, %p120
      %p122 = scmp.ne.s32.totalorder %s111, %s114
      %p123 = scmp.eq.s32.totalorder %s22, 1
      %p124 = por %p122, %p123
      %p125 = scmp.ne.s32.totalorder %s114, %s115
      %p126 = scmp.eq.s32.totalorder %s22, 0
      %p127 = por %p125, %p126
      %p128 = scmp.ne.s32.totalorder %s114, %s115
      %p129 = scmp.eq.s32.totalorder %s23, 1
      %p130 = por %p128, %p129
      %p132 = scmp.ne.s32.totalorder %s115, %s131
      %p133 = scmp.eq.s32.totalorder %s23, 0
      %p134 = por %p132, %p133
      %p135 = scmp.le.s32.totalorder 1, %s17
      %p136 = scmp.lt.s32.totalorder %s17, 3
      %p137 = pnand %p135, %p136
      %p138 = pneg %p137
      // Predicated region
      $region9: #{tpu_custom_call.1} parent=5 // pred_check
        _
      $region10: #{tpu_custom_call.1} parent=5 // pred_check_branch
        %140 = sbr.rel (%p137) target = $region12
      $region11: #{tpu_custom_call.1} parent=5 // pred_region
        %s141 = ssub.s32 %s17, 1
        // Predicated region
        $region13: #{tpu_custom_call.1} parent=11 // pred_check
          %p142 = pneg %p50
        $region14: #{tpu_custom_call.1} parent=11 // pred_check_branch
          %144 = sbr.rel (%p142) target = $region16
        $region15: #{tpu_custom_call.1} parent=11 // pred_region
          _
        $region16: #{tpu_custom_call.1} parent=11 // pred_fallthru
          _
        // Predicated region
        $region17: #{tpu_custom_call.1} parent=11 // pred_check
          %p145 = pneg %p99
        $region18: #{tpu_custom_call.1} parent=11 // pred_check_branch
          %147 = sbr.rel (%p145) target = $region20
        $region19: #{tpu_custom_call.1} parent=11 // pred_region
          %s149 = ssub.s32 512, 512
          %150 = vsyncadd [#allocation7], %s149
          %s151 = sshll.u32 [#allocation6], 4
          %s152 = int_to_ptr.vmem [resolvable:$true] %s151
          %157 = dma.hbm_to_vmem [thread:$0]  %s2, 512, %s152, [#allocation7], 128, 128, 8
        $region20: #{tpu_custom_call.1} parent=11 // pred_fallthru
          _
      $region12: #{tpu_custom_call.1} parent=5 // pred_fallthru
        _
      %p158 = scmp.lt.s32.totalorder %s17, 2
      // Predicated region
      $region21: #{tpu_custom_call.1} parent=5 // pred_check
        %p159 = pneg %p158
      $region22: #{tpu_custom_call.1} parent=5 // pred_check_branch
        %161 = sbr.rel (%p159) target = $region24
      $region23: #{tpu_custom_call.1} parent=5 // pred_region
        // Predicated region
        $region25: #{tpu_custom_call.1} parent=23 // pred_check
          %p162 = pneg %p72
        $region26: #{tpu_custom_call.1} parent=23 // pred_check_branch
          %164 = sbr.rel (%p162) target = $region28
        $region27: #{tpu_custom_call.1} parent=23 // pred_region
          %s165 = sand.u32 %s62, 1
          %s166 = scalar_lea.sflag [#allocation4], %s165
          %s167 = sand.u32 %s62, 1
          %s168 = smul.addr %s167, 32
          %s169 = scalar_lea.vmem [#allocation3], %s168
          %s170 = smul.u32 4, %s24
          %s172 = ssub.s32 512, 512
          %173 = vsyncadd %s166, %s172
          %s174 = smul.addr %s25, 4
          %s175 = sadd.s32 %s170, %s174
          %s176 = smul.addr %s175, 128
          %s177 = scalar_lea.hbm %s1, %s176
          %s178 = sshll.u32 %s169, 4
          %s179 = int_to_ptr.vmem [resolvable:$true] %s178
          %184 = dma.hbm_to_vmem [thread:$0]  %s177, 512, %s179, %s166, 128, 128, 8
        $region28: #{tpu_custom_call.1} parent=23 // pred_fallthru
          _
      $region24: #{tpu_custom_call.1} parent=5 // pred_fallthru
        _
      %p185 = scmp.le.s32.totalorder 1, %s17
      %p186 = scmp.lt.s32.totalorder %s17, 3
      %p187 = pnand %p185, %p186
      %p188 = pneg %p187
      // Predicated region
      $region29: #{tpu_custom_call.1} parent=5 // pred_check
        _
      $region30: #{tpu_custom_call.1} parent=5 // pred_check_branch
        %190 = sbr.rel (%p187) target = $region32
      $region31: #{tpu_custom_call.1} parent=5 // pred_region
        %s191 = ssub.s32 %s17, 1
        %s192 = sand.u32 %s65, 1
        %s193 = scalar_lea.sflag [#allocation4], %s192
        %s194 = sand.u32 %s65, 1
        %s195 = smul.addr %s194, 32
        %s196 = scalar_lea.vmem [#allocation3], %s195
        // Predicated region
        $region33: #{tpu_custom_call.1} parent=31 // pred_check
          %p197 = pneg %p78
        $region34: #{tpu_custom_call.1} parent=31 // pred_check_branch
          %199 = sbr.rel (%p197) target = $region36
        $region35: #{tpu_custom_call.1} parent=31 // pred_region
          %200 = dma.done %s193, 512
        $region36: #{tpu_custom_call.1} parent=31 // pred_fallthru
          _
        // Predicated region
        $region37: #{tpu_custom_call.1} parent=31 // pred_check
          %p201 = pneg %p99
        $region38: #{tpu_custom_call.1} parent=31 // pred_check_branch
          %203 = sbr.rel (%p201) target = $region40
        $region39: #{tpu_custom_call.1} parent=31 // pred_region
          %204 = dma.done [#allocation7], 512
        $region40: #{tpu_custom_call.1} parent=31 // pred_fallthru
          _
        %p205 = pneg %p50
        %p206 = pneg %p47
        %s207 = sand.u32 %s65, 1
        %s208 = scalar_lea.sflag [#allocation4], %s207
        %s209 = sand.u32 %s65, 1
        %s210 = smul.addr %s209, 32
        %s211 = scalar_lea.vmem [#allocation3], %s210
        %p212 = pneg %p78
        %p213 = pneg %p75
        %p214 = pneg %p99
        %p215 = pneg %p96
        %p216 = pneg %p127
        %p217 = pneg %p124
        %s218 = sand.u32 %s114, 1
        %s219 = scalar_lea.sflag [#allocation5], %s218
        %s220 = sand.u32 %s114, 1
        %s221 = smul.addr %s220, 32
        %s222 = scalar_lea.vmem [#allocation8], %s221
        %s223 = smul.u32 4, %s26
        %s224 = smul.u32 4, %s26
        %s225 = sld [smem:[#allocation2]]
        %v226 = vld [vmem:[%s196] sm:$0xff]
        %v227 = vld [vmem:[%s196 + $0x8] sm:$0xff]
        %v228 = vld [vmem:[%s196 + $0x10] sm:$0xff]
        %v229 = vld [vmem:[%s196 + $0x18] sm:$0xff]
        %v230 = vld [vmem:[#allocation6] sm:$0xff]
        %v231 = vld [vmem:[#allocation6 + $0x8] sm:$0xff]
        %v232 = vld [vmem:[#allocation6 + $0x10] sm:$0xff]
        %v233 = vld [vmem:[#allocation6 + $0x18] sm:$0xff]
        %v234 = vstv %s225
        %v235 = vmul.f32 %v230, %v234
        %v236 = vmul.f32 %v231, %v234
        %v237 = vmul.f32 %v232, %v234
        %v238 = vmul.f32 %v233, %v234
        %v239 = vsub.f32 %v226, %v235
        %v240 = vsub.f32 %v227, %v236
        %v241 = vsub.f32 %v228, %v237
        %v242 = vsub.f32 %v229, %v238
        %243 = vst [vmem:[%s222] sm:$0xff] %v239
        %244 = vst [vmem:[%s222 + $0x8] sm:$0xff] %v240
        %245 = vst [vmem:[%s222 + $0x10] sm:$0xff] %v241
        %246 = vst [vmem:[%s222 + $0x18] sm:$0xff] %v242
        %s247 = sand.u32 %s114, 1
        %s248 = scalar_lea.sflag [#allocation5], %s247
        %s249 = sand.u32 %s114, 1
        %s250 = smul.addr %s249, 32
        %s251 = scalar_lea.vmem [#allocation8], %s250
        // Predicated region
        $region41: #{tpu_custom_call.1} parent=31 // pred_check
          %p252 = pneg %p124
        $region42: #{tpu_custom_call.1} parent=31 // pred_check_branch
          %254 = sbr.rel (%p252) target = $region44
        $region43: #{tpu_custom_call.1} parent=31 // pred_region
          %s255 = smul.u32 4, %s26
          %s257 = ssub.s32 512, 512
          %258 = vsyncadd %s248, %s257
          %s259 = smul.addr %s27, 4
          %s260 = sadd.s32 %s255, %s259
          %s261 = smul.addr %s260, 128
          %s262 = scalar_lea.hbm %s3, %s261
          %s263 = sshll.u32 %s251, 4
          %s264 = int_to_ptr.vmem [resolvable:$true] %s263
          %269 = dma.vmem_to_hbm [thread:$0]  %s264, 512, %s262, %s248, 128, 128, 8
        $region44: #{tpu_custom_call.1} parent=31 // pred_fallthru
          _
      $region32: #{tpu_custom_call.1} parent=5 // pred_fallthru
        _
      %p270 = scmp.le.s32.totalorder 2, %s17
      // Predicated region
      $region45: #{tpu_custom_call.1} parent=5 // pred_check
        %p271 = pneg %p270
      $region46: #{tpu_custom_call.1} parent=5 // pred_check_branch
        %273 = sbr.rel (%p271) target = $region48
      $region47: #{tpu_custom_call.1} parent=5 // pred_region
        %s274 = ssub.s32 %s17, 2
        // Predicated region
        $region49: #{tpu_custom_call.1} parent=47 // pred_check
          %p275 = pneg %p130
        $region50: #{tpu_custom_call.1} parent=47 // pred_check_branch
          %277 = sbr.rel (%p275) target = $region52
        $region51: #{tpu_custom_call.1} parent=47 // pred_region
          %s278 = sand.u32 %s115, 1
          %s279 = scalar_lea.sflag [#allocation5], %s278
          %s280 = sand.u32 %s115, 1
          %s281 = smul.addr %s280, 32
          %s282 = scalar_lea.vmem [#allocation8], %s281
          %283 = dma.done %s279, 512
        $region52: #{tpu_custom_call.1} parent=47 // pred_fallthru
          _
      $region48: #{tpu_custom_call.1} parent=5 // pred_fallthru
        _
    $region6: #{tpu_custom_call.1} parent=1 // loop_footer
      %s21 = sadd.s32 1, %s17
    $region7: #{tpu_custom_call.1} parent=1 // loop_footer_branch
      %16 = sbr.rel target = $region3
    $region8: #{tpu_custom_call.1} parent=1 // loop_exit
      _
    %284 = vsyncpa [#allocation4], 1
    %s285 = scalar_lea.sflag [#allocation4], 1
    %286 = vsyncpa %s285, 1
    %287 = vsyncpa [#allocation7], 1
    %288 = vsyncpa [#allocation5], 1
    %s289 = scalar_lea.sflag [#allocation5], 1
    %290 = vsyncpa %s289, 1

</llo_original>
